<compile_context>
chip_gen: v6e
topology: v6e:2x2x1
jax: 0.10.0
libtpu: 0.0.40
codegen_flags: <defaults>
</compile_context>

<pallas_src>
import functools

import jax
import jax.numpy as jnp
from jax.experimental import pallas as pl
from jax.experimental.pallas import tpu as pltpu


_TB_MAX = 32768            # VMEM guardrail: ~0.3 KB/row => < 10 MiB at the cap
_SMALL_BATCH_CUTOFF = 256  # below this, plain XLA beats a kernel launch


def actor_kernel(xt_ref, w1a_ref, w2a_ref, out_ref, xaug_ref, *,
                 action_bound: float):
    """Fused 2-layer MLP tile, batch on lanes, biases folded into the dots.

    xt_ref  : [S, TB]      input tile (features on sublanes, batch on lanes)
    w1a_ref : [H+1, S+1]   [[W1^T, b1], [0...0, 1]]  (f32, VMEM-resident)
    w2a_ref : [A, H+1]     [W2^T, b2]                (f32, VMEM-resident)
    out_ref : [A, TB]      tanh(.) * action_bound    (lane-dense store)
    xaug_ref: [S+1, TB]    f32 scratch: rows 0..S-1 = x tile, row S = 1.0
    """
    s = xt_ref.shape[0]
    tb = xaug_ref.shape[1]
    # Stage the x tile (cast to f32 if it streamed as bf16) plus the ones row
    # that carries both biases through the matmuls.
    xaug_ref[0:s, :] = xt_ref[...].astype(jnp.float32)
    xaug_ref[s:s + 1, :] = jnp.ones((1, tb), jnp.float32)

    h = jnp.dot(w1a_ref[...], xaug_ref[...],
                preferred_element_type=jnp.float32)            # [H+1, TB]
    h = jnp.maximum(h, 0.0)            # ReLU; the ones row stays exactly 1.0
    a = jnp.dot(w2a_ref[...], h,
                preferred_element_type=jnp.float32)            # [A, TB]
    out_ref[...] = (jnp.tanh(a) * action_bound).astype(out_ref.dtype)


def _round_up(n: int, m: int) -> int:
    return ((n + m - 1) // m) * m


def _pick_batch_tile(batch: int) -> int:
    """Lane-aligned batch tile: >= 2 balanced tiles whenever B > 128 (so v7x
    megacore splits the work), as large as possible otherwise, VMEM-capped."""
    if batch <= 128:
        return 128
    return min(_round_up(pl.cdiv(batch, 2), 128), _TB_MAX)


def _augment_weights(w1, b1, w2, b2):
    """Bias-folded weights.

    w1: [S, H], b1: [1, H] or [H], w2: [H, A], b2: [1, A] or [A].
    Returns w1a [H+1, S+1] = [[W1^T, b1], [0, 1]] and w2a [A, H+1] = [W2^T, b2].
    """
    S, H = w1.shape
    A = w2.shape[1]
    w1a = jnp.zeros((H + 1, S + 1), jnp.float32)
    w1a = w1a.at[:H, :S].set(w1.T.astype(jnp.float32))
    w1a = w1a.at[:H, S].set(jnp.reshape(b1, (H,)).astype(jnp.float32))
    w1a = w1a.at[H, S].set(1.0)
    w2a = jnp.concatenate(
        [w2.T.astype(jnp.float32),
         jnp.reshape(b2, (A, 1)).astype(jnp.float32)], axis=1)
    return w1a, w2a


def actor_forward_feature_major(xt, w1, b1, w2, b2, action_bound):
    """Preferred (kernel) entry point.

    xt: [state_dim, B] feature-major (f32 or bf16) -- no pad / transpose of
        the dominant HBM stream is ever materialized.
    Returns [action_dim, B] float32.
    """
    S, B = xt.shape
    H = w1.shape[1]
    A = w2.shape[1]
    TB = _pick_batch_tile(B)
    grid = (pl.cdiv(B, TB),)        # tail block handled by Pallas masking

    w1a, w2a = _augment_weights(w1, b1, w2, b2)
    kernel = functools.partial(actor_kernel, action_bound=float(action_bound))

    cost = pl.CostEstimate(
        flops=2 * B * ((S + 1) * (H + 1) + (H + 1) * A),
        transcendentals=B * A,
        bytes_accessed=(xt.size * xt.dtype.itemsize
                        + 4 * (B * A + w1a.size + w2a.size)),
    )

    return pl.pallas_call(
        kernel,
        out_shape=jax.ShapeDtypeStruct((A, B), jnp.float32),
        grid=grid,
        in_specs=[
            pl.BlockSpec((S, TB), lambda i: (0, i)),           # x streams
            pl.BlockSpec((H + 1, S + 1), lambda i: (0, 0)),    # weights resident
            pl.BlockSpec((A, H + 1), lambda i: (0, 0)),
        ],
        out_specs=pl.BlockSpec((A, TB), lambda i: (0, i)),
        scratch_shapes=[pltpu.VMEM((S + 1, TB), jnp.float32)],
        compiler_params=pltpu.CompilerParams(
            dimension_semantics=("parallel",)),                # megacore on v7x
        cost_estimate=cost,
    )(xt, w1a, w2a)


def actor_reference(x, w1, b1, w2, b2, action_bound):
    """Plain-jnp reference (also serves as the small-batch fast path)."""
    h = jnp.maximum(x @ w1 + jnp.reshape(b1, (1, -1)), 0.0)
    return jnp.tanh(h @ w2 + jnp.reshape(b2, (1, -1))) * action_bound


def actor_forward(x, w1, b1, w2, b2, action_bound):
    """PyTorch-layout wrapper: x [B, state_dim] -> [B, action_dim].

    Small batches (online inference) skip Pallas: a single-tile launch is
    pure overhead at ~240 FLOPs/row.  Large (replay-buffer-sized) batches go
    through the kernel; the one-off transpose below is the only extra HBM
    pass over x.
    """
    B = x.shape[0]
    if B <= _SMALL_BATCH_CUTOFF:
        return actor_reference(x, w1, b1, w2, b2, action_bound)
    # TODO(synk): if the replay-buffer sampler can emit x as [state_dim, B],
    # call actor_forward_feature_major directly and drop this transpose copy.
    out_t = actor_forward_feature_major(x.T, w1, b1, w2, b2, action_bound)
    return out_t.T


def init_params(key, state_dim, action_dim, hidden=30):
    """Synthetic parameters matching the PyTorch module shapes.

    Weights ~ N(0, 0.3) like `.data.normal_(0.0, 0.3)`; biases use PyTorch's
    default Linear init U(-1/sqrt(fan_in), 1/sqrt(fan_in)).  Stored as
    [in, out]; the wrapper builds the bias-folded [out, in] forms.
    """
    k1, k2, k3, k4 = jax.random.split(key, 4)
    w1 = 0.3 * jax.random.normal(k1, (state_dim, hidden), jnp.float32)
    w2 = 0.3 * jax.random.normal(k2, (hidden, action_dim), jnp.float32)
    bnd1 = 1.0 / jnp.sqrt(jnp.float32(state_dim))
    bnd2 = 1.0 / jnp.sqrt(jnp.float32(hidden))
    b1 = jax.random.uniform(k3, (1, hidden), jnp.float32, -bnd1, bnd1)
    b2 = jax.random.uniform(k4, (1, action_dim), jnp.float32, -bnd2, bnd2)
    return w1, b1, w2, b2


if __name__ == "__main__":
    # Pendulum-like problem: state_dim=3, action_dim=1, bound=2.0.
    state_dim, action_dim, hidden = 3, 1, 30
    action_bound = 2.0

    key = jax.random.PRNGKey(0)
    kx, kp = jax.random.split(key)
    w1, b1, w2, b2 = init_params(kp, state_dim, action_dim, hidden)

    # 1) Kernel path, feature-major input (no wrapper transpose), 2 tiles with
    #    a masked tail (B=600 -> TB=384, grid=2).
    B1 = 600
    xt = jax.random.normal(kx, (state_dim, B1), jnp.float32)
    out_t = jax.block_until_ready(
        actor_forward_feature_major(xt, w1, b1, w2, b2, action_bound))
    ref_t = actor_reference(xt.T, w1, b1, w2, b2, action_bound).T
    assert out_t.shape == (action_dim, B1)
    assert jnp.allclose(out_t, ref_t, atol=1e-5, rtol=1e-5)

    # 2) Batch-major compatibility path through the kernel (B=384 -> TB=256,
    #    grid=2, second block half-masked).
    B2 = 384
    x2 = jax.random.normal(jax.random.fold_in(kx, 1), (B2, state_dim),
                           jnp.float32)
    out2 = jax.block_until_ready(
        actor_forward(x2, w1, b1, w2, b2, action_bound))
    ref2 = actor_reference(x2, w1, b1, w2, b2, action_bound)
    assert out2.shape == (B2, action_dim)
    assert jnp.allclose(out2, ref2, atol=1e-5, rtol=1e-5)

    # 3) Small-batch fast path (online inference: pure jnp, no Pallas launch).
    B3 = 4
    x3 = jax.random.normal(jax.random.fold_in(kx, 2), (B3, state_dim),
                           jnp.float32)
    out3 = jax.block_until_ready(
        actor_forward(x3, w1, b1, w2, b2, action_bound))
    assert out3.shape == (B3, action_dim)
    assert jnp.allclose(out3,
                        actor_reference(x3, w1, b1, w2, b2, action_bound),
                        atol=1e-5, rtol=1e-5)

    print("KERNEL_OK")
</pallas_src>

<mosaic_0001>
module attributes {stable_mosaic.version = 11 : i64} {
  func.func @actor_kernel(%arg0: i32, %arg1: memref<3x384xf32, #tpu.memory_space<vmem>>, %arg2: memref<31x4xf32, #tpu.memory_space<vmem>>, %arg3: memref<1x31xf32, #tpu.memory_space<vmem>>, %arg4: memref<1x384xf32, #tpu.memory_space<vmem>>, %arg5: memref<4x384xf32, #tpu.memory_space<vmem>>) attributes {dimension_semantics = [#tpu.dimension_semantics<parallel>], iteration_bounds = array<i64: 2>, scalar_prefetch = 0 : i64, scratch_operands = 1 : i64, tpu.core_type = #tpu.core_type<tc>, window_params = [{transform_indices = @transform_0, window_bounds = array<i64: 3, 384>}, {pipeline_mode = #tpu.pipeline_mode<synchronous>, transform_indices = @transform_1, window_bounds = array<i64: 31, 4>}, {pipeline_mode = #tpu.pipeline_mode<synchronous>, transform_indices = @transform_2, window_bounds = array<i64: 1, 31>}, {transform_indices = @transform_3, window_bounds = array<i64: 1, 384>}]} {
    %c0 = arith.constant 0 : index
    %c0_0 = arith.constant 0 : index
    %0 = vector.load %arg1[%c0, %c0_0] : memref<3x384xf32, #tpu.memory_space<vmem>>, vector<3x384xf32>
    %c0_1 = arith.constant 0 : index
    %c0_2 = arith.constant 0 : index
    %1 = vector.load %arg5[%c0_1, %c0_2] : memref<4x384xf32, #tpu.memory_space<vmem>>, vector<3x384xf32>
    tpu.vector_store %arg5[%c0_1, %c0_2], %0 {strides = array<i32>} : memref<4x384xf32, #tpu.memory_space<vmem>>, vector<3x384xf32>,
    %cst = arith.constant 1.000000e+00 : f32
    %2 = vector.broadcast %cst : f32 to vector<1x384xf32>
    %c3 = arith.constant 3 : index
    %c0_3 = arith.constant 0 : index
    %3 = vector.load %arg5[%c3, %c0_3] : memref<4x384xf32, #tpu.memory_space<vmem>>, vector<1x384xf32>
    tpu.vector_store %arg5[%c3, %c0_3], %2 {strides = array<i32>} : memref<4x384xf32, #tpu.memory_space<vmem>>, vector<1x384xf32>,
    %c0_4 = arith.constant 0 : index
    %c0_5 = arith.constant 0 : index
    %4 = vector.load %arg2[%c0_4, %c0_5] : memref<31x4xf32, #tpu.memory_space<vmem>>, vector<31x4xf32>
    %c0_6 = arith.constant 0 : index
    %c0_7 = arith.constant 0 : index
    %5 = vector.load %arg5[%c0_6, %c0_7] : memref<4x384xf32, #tpu.memory_space<vmem>>, vector<4x384xf32>
    %cst_8 = arith.constant dense<0.000000e+00> : vector<31x384xf32>
    %6 = tpu.matmul %4, %5, %cst_8 {dimension_numbers = #tpu.dot_dimension_numbers<[1], [0], [0], [1], [0, 0, 1, 1], [], []>} : vector<31x4xf32>, vector<4x384xf32>, vector<31x384xf32> -> vector<31x384xf32>
    %cst_9 = arith.constant 0.000000e+00 : f32
    %7 = vector.broadcast %cst_9 : f32 to vector<31x384xf32>
    %8 = arith.maximumf %6, %7 : vector<31x384xf32>
    %c0_10 = arith.constant 0 : index
    %c0_11 = arith.constant 0 : index
    %9 = vector.load %arg3[%c0_10, %c0_11] : memref<1x31xf32, #tpu.memory_space<vmem>>, vector<1x31xf32>
    %cst_12 = arith.constant dense<0.000000e+00> : vector<1x384xf32>
    %10 = tpu.matmul %9, %8, %cst_12 {dimension_numbers = #tpu.dot_dimension_numbers<[1], [0], [0], [1], [0, 0, 1, 1], [], []>} : vector<1x31xf32>, vector<31x384xf32>, vector<1x384xf32> -> vector<1x384xf32>
    %11 = math.tanh %10 : vector<1x384xf32>
    %cst_13 = arith.constant 2.000000e+00 : f32
    %12 = vector.broadcast %cst_13 : f32 to vector<1x384xf32>
    %13 = arith.mulf %11, %12 : vector<1x384xf32>
    %c0_14 = arith.constant 0 : index
    %c0_15 = arith.constant 0 : index
    %14 = vector.load %arg4[%c0_14, %c0_15] : memref<1x384xf32, #tpu.memory_space<vmem>>, vector<1x384xf32>
    tpu.vector_store %arg4[%c0_14, %c0_15], %13 {strides = array<i32>} : memref<1x384xf32, #tpu.memory_space<vmem>>, vector<1x384xf32>,
    return
  }
  func.func @transform_0(%arg0: i32) -> (i32, i32) {
    %c0_i32 = arith.constant 0 : i32
    %c0_i32_0 = arith.constant 0 : i32
    return %c0_i32, %arg0 : i32, i32
  }
  func.func @transform_1(%arg0: i32) -> (i32, i32) {
    %c0_i32 = arith.constant 0 : i32
    %c0_i32_0 = arith.constant 0 : i32
    %c0_i32_1 = arith.constant 0 : i32
    return %c0_i32, %c0_i32_0 : i32, i32
  }
  func.func @transform_2(%arg0: i32) -> (i32, i32) {
    %c0_i32 = arith.constant 0 : i32
    %c0_i32_0 = arith.constant 0 : i32
    %c0_i32_1 = arith.constant 0 : i32
    return %c0_i32, %c0_i32_0 : i32, i32
  }
  func.func @transform_3(%arg0: i32) -> (i32, i32) {
    %c0_i32 = arith.constant 0 : i32
    %c0_i32_0 = arith.constant 0 : i32
    return %c0_i32, %arg0 : i32, i32
  }
}

</mosaic_0001>

<llo_original>
// kernel: tpu_custom_call.1
$region0: #{tpu_custom_call.1}
  #allocation0 [shape = 'u32[]', space=smem, size = 0x4, offset = 0x4, fixed_abs, tag = 'smem constant byte address 0x4 - core index']
  #allocation1 [shape = 'u32[144,128]{1,0:T(1,128)}', space=vmem, size = 0x12000, scoped, tag = 'internal scratch']
  #allocation2 [shape = 'f32[4,384]{1,0:T(4,128)}', space=vmem, size = 0x1800, scoped, tag = 'scratch operand']
  %s0 = inlined_call_operand.vmem [shape: f32[3,600], index: 0, kind: input, shape index: {}]
  %s1 = inlined_call_operand.vmem [shape: f32[31,4], index: 1, kind: input, shape index: {}]
  %s2 = inlined_call_operand.vmem [shape: f32[1,31], index: 2, kind: input, shape index: {}]
  %s3 = inlined_call_operand.hbm [shape: f32[1,600], index: 3, kind: output, shape index: {}]
  %s4 = sld [smem:[#allocation0]]
  $region45: #{tpu_custom_call.1} parent=0
    _
  %s6 = ssub.s32 1, %s4
  %s7 = scalar_select 0, %s6, %s4
  $region1: #{tpu_custom_call.1} parent=0
    #allocation3 [shape = 'u8[3072]{0}', space=vmem, size = 0xc00, scoped, tag = 'output window, operand 0']
    #allocation4 [shape = 's32[2]{0}', space=sflag, size = 0x8, scoped, tag = 'scoped memory for tpu_custom_call.1']
    %8 = vsyncpa [#allocation4], 0
    %s9 = scalar_lea.sflag [#allocation4], 1
    %10 = vsyncpa %s9, 0
    loop: start=0, step=1, limit=4
    $region2: #{tpu_custom_call.1} parent=1 // loop_pre_header
      _
    $region3: #{tpu_custom_call.1} parent=1 // loop_header
      %s12 = sphi 0, %s16
      %p13 = scmp.ge.s32.totalorder %s12, 4
      %s22 = sphi 0, %s24
      %s25 = sphi 0, %s22
      %s26 = sphi 0, %s25
      %s42 = sphi 0, %s26
      %s46 = sphi 0, %s46
      %s48 = sphi 0, %s46
      %s49 = sphi 0, %s48
      %s63 = sphi 0, %s49
      %s67 = sphi 0, %s67
      %s69 = sphi 0, %s67
      %s70 = sphi 0, %s69
      %s84 = sphi 0, %s70
      %s90 = sphi 0, %s92
      %s93 = sphi 0, %s90
      %s94 = sphi 0, %s93
      %s110 = sphi 0, %s94
    $region4: #{tpu_custom_call.1} parent=1 // loop_header_branch
      %15 = sbr.rel (%p13) target = $region8
    $region5: #{tpu_custom_call.1} parent=1 // loop_body
      %s17 = ssub.s32 %s12, 1
      %s18 = ssub.s32 %s12, 2
      %s19 = sadd.s32 %s12, 1
      %s20 = ssub.s32 %s12, %s19
      %p21 = scmp.eq.s32.totalorder %s20, 0
      %s23 = sadd.s32 %s22, 1
      %s24 = scalar_select %p21, %s22, %s23
      %p27 = pneg %p21
      %p28 = scmp.eq.s32.totalorder %s12, 1
      %p29 = por %p27, %p28
      %p30 = scmp.ne.s32.totalorder %s22, %s25
      %p31 = scmp.eq.s32.totalorder %s12, 0
      %p32 = por %p30, %p31
      %p33 = scmp.ne.s32.totalorder %s22, %s25
      %p34 = scmp.eq.s32.totalorder %s17, 1
      %p35 = por %p33, %p34
      %p36 = scmp.ne.s32.totalorder %s25, %s26
      %p37 = scmp.eq.s32.totalorder %s17, 0
      %p38 = por %p36, %p37
      %p39 = scmp.ne.s32.totalorder %s25, %s26
      %p40 = scmp.eq.s32.totalorder %s18, 1
      %p41 = por %p39, %p40
      %p43 = scmp.ne.s32.totalorder %s26, %s42
      %p44 = scmp.eq.s32.totalorder %s18, 0
      %p45 = por %p43, %p44
      %s47 = sadd.s32 %s46, 1
      %p50 = scmp.eq.s32.totalorder %s12, 1
      %p51 = scmp.ne.s32.totalorder %s46, %s48
      %p52 = scmp.eq.s32.totalorder %s12, 0
      %p53 = por %p51, %p52
      %p54 = scmp.ne.s32.totalorder %s46, %s48
      %p55 = scmp.eq.s32.totalorder %s17, 1
      %p56 = por %p54, %p55
      %p57 = scmp.ne.s32.totalorder %s48, %s49
      %p58 = scmp.eq.s32.totalorder %s17, 0
      %p59 = por %p57, %p58
      %p60 = scmp.ne.s32.totalorder %s48, %s49
      %p61 = scmp.eq.s32.totalorder %s18, 1
      %p62 = por %p60, %p61
      %p64 = scmp.ne.s32.totalorder %s49, %s63
      %p65 = scmp.eq.s32.totalorder %s18, 0
      %p66 = por %p64, %p65
      %s68 = sadd.s32 %s67, 1
      %p71 = scmp.eq.s32.totalorder %s12, 1
      %p72 = scmp.ne.s32.totalorder %s67, %s69
      %p73 = scmp.eq.s32.totalorder %s12, 0
      %p74 = por %p72, %p73
      %p75 = scmp.ne.s32.totalorder %s67, %s69
      %p76 = scmp.eq.s32.totalorder %s17, 1
      %p77 = por %p75, %p76
      %p78 = scmp.ne.s32.totalorder %s69, %s70
      %p79 = scmp.eq.s32.totalorder %s17, 0
      %p80 = por %p78, %p79
      %p81 = scmp.ne.s32.totalorder %s69, %s70
      %p82 = scmp.eq.s32.totalorder %s18, 1
      %p83 = por %p81, %p82
      %p85 = scmp.ne.s32.totalorder %s70, %s84
      %p86 = scmp.eq.s32.totalorder %s18, 0
      %p87 = por %p85, %p86
      %s88 = ssub.s32 %s12, %s19
      %p89 = scmp.eq.s32.totalorder %s88, 0
      %s91 = sadd.s32 %s90, 1
      %s92 = scalar_select %p89, %s90, %s91
      %p95 = pneg %p89
      %p96 = scmp.eq.s32.totalorder %s12, 1
      %p97 = por %p95, %p96
      %p98 = scmp.ne.s32.totalorder %s90, %s93
      %p99 = scmp.eq.s32.totalorder %s12, 0
      %p100 = por %p98, %p99
      %p101 = scmp.ne.s32.totalorder %s90, %s93
      %p102 = scmp.eq.s32.totalorder %s17, 1
      %p103 = por %p101, %p102
      %p104 = scmp.ne.s32.totalorder %s93, %s94
      %p105 = scmp.eq.s32.totalorder %s17, 0
      %p106 = por %p104, %p105
      %p107 = scmp.ne.s32.totalorder %s93, %s94
      %p108 = scmp.eq.s32.totalorder %s18, 1
      %p109 = por %p107, %p108
      %p111 = scmp.ne.s32.totalorder %s94, %s110
      %p112 = scmp.eq.s32.totalorder %s18, 0
      %p113 = por %p111, %p112
      %p114 = scmp.le.s32.totalorder 1, %s12
      %p115 = scmp.lt.s32.totalorder %s12, 3
      %p116 = pnand %p114, %p115
      %p117 = pneg %p116
      // Predicated region
      $region9: #{tpu_custom_call.1} parent=5 // pred_check
        _
      $region10: #{tpu_custom_call.1} parent=5 // pred_check_branch
        %119 = sbr.rel (%p116) target = $region12
      $region11: #{tpu_custom_call.1} parent=5 // pred_region
        %s120 = ssub.s32 %s12, 1
        // Predicated region
        $region13: #{tpu_custom_call.1} parent=11 // pred_check
          %p121 = pneg %p59
        $region14: #{tpu_custom_call.1} parent=11 // pred_check_branch
          %123 = sbr.rel (%p121) target = $region16
        $region15: #{tpu_custom_call.1} parent=11 // pred_region
          _
        $region16: #{tpu_custom_call.1} parent=11 // pred_fallthru
          _
        // Predicated region
        $region17: #{tpu_custom_call.1} parent=11 // pred_check
          %p124 = pneg %p80
        $region18: #{tpu_custom_call.1} parent=11 // pred_check_branch
          %126 = sbr.rel (%p124) target = $region20
        $region19: #{tpu_custom_call.1} parent=11 // pred_region
          _
        $region20: #{tpu_custom_call.1} parent=11 // pred_fallthru
          _
      $region12: #{tpu_custom_call.1} parent=5 // pred_fallthru
        _
      %p127 = scmp.lt.s32.totalorder %s12, 2
      // Predicated region
      $region21: #{tpu_custom_call.1} parent=5 // pred_check
        %p128 = pneg %p127
      $region22: #{tpu_custom_call.1} parent=5 // pred_check_branch
        %130 = sbr.rel (%p128) target = $region24
      $region23: #{tpu_custom_call.1} parent=5 // pred_region
        // Predicated region
        $region25: #{tpu_custom_call.1} parent=23 // pred_check
          %p131 = pneg %p32
        $region26: #{tpu_custom_call.1} parent=23 // pred_check_branch
          %133 = sbr.rel (%p131) target = $region28
        $region27: #{tpu_custom_call.1} parent=23 // pred_region
          %s134 = smul.u32 3, %s12
          %s135 = ssub.s32 5, %s134
          %p136 = scmp.lt.s32.totalorder %s135, 3
          %s137 = scalar_select %p136, %s135, 3
          %s138 = smul.u32 64, %s137
          %p139 = scmp.lt.s32.totalorder %s134, 4
          %s140 = scalar_select %p139, %s134, 4
          %s141 = smul.addr %s140, 4
          %s142 = scalar_lea.vmem %s0, %s141
          %s143 = smul.u32 3, %s12
          %s144 = ssub.s32 5, %s143
          %p145 = scmp.lt.s32.totalorder %s144, 3
          %s146 = scalar_select %p145, %s144, 3
          %s147 = smul.u32 64, %s146
        $region28: #{tpu_custom_call.1} parent=23 // pred_fallthru
          _
      $region24: #{tpu_custom_call.1} parent=5 // pred_fallthru
        _
      %p148 = scmp.le.s32.totalorder 1, %s12
      %p149 = scmp.lt.s32.totalorder %s12, 3
      %p150 = pnand %p148, %p149
      %p151 = pneg %p150
      // Predicated region
      $region29: #{tpu_custom_call.1} parent=5 // pred_check
        _
      $region30: #{tpu_custom_call.1} parent=5 // pred_check_branch
        %153 = sbr.rel (%p150) target = $region32
      $region31: #{tpu_custom_call.1} parent=5 // pred_region
        %s154 = ssub.s32 %s12, 1
        %s155 = smul.u32 3, %s17
        %s156 = ssub.s32 5, %s155
        %p157 = scmp.lt.s32.totalorder %s156, 3
        %s158 = scalar_select %p157, %s156, 3
        %s159 = smul.u32 64, %s158
        %p160 = scmp.lt.s32.totalorder %s155, 4
        %s161 = scalar_select %p160, %s155, 4
        %s162 = smul.addr %s161, 4
        %s163 = scalar_lea.vmem %s0, %s162
        %p164 = pneg %p38
        %p165 = pneg %p35
        %p166 = pneg %p59
        %p167 = pneg %p56
        %p168 = pneg %p80
        %p169 = pneg %p77
        %p170 = pneg %p106
        %p171 = pneg %p103
        %s172 = sand.u32 %s93, 1
        %s173 = scalar_lea.sflag [#allocation4], %s172
        %s174 = sand.u32 %s93, 1
        %s175 = smul.addr %s174, 3
        %s176 = scalar_lea.vmem [#allocation3], %s175
        %s177 = smul.u32 3, %s17
        %s178 = ssub.s32 5, %s177
        %p179 = scmp.lt.s32.totalorder %s178, 3
        %s180 = scalar_select %p179, %s178, 3
        %s181 = smul.u32 64, %s180
        %p182 = scmp.lt.s32.totalorder %s177, 4
        %s183 = scalar_select %p182, %s177, 4
        %s184 = smul.addr %s183, 4
        %s185 = scalar_lea.vmem %s0, %s184
        %s186 = smul.u32 3, %s17
        %s187 = ssub.s32 5, %s186
        %p188 = scmp.lt.s32.totalorder %s187, 3
        %s189 = scalar_select %p188, %s187, 3
        %s190 = smul.u32 64, %s189
        %s191 = smul.u32 3, %s17
        %s192 = ssub.s32 5, %s191
        %p193 = scmp.lt.s32.totalorder %s192, 3
        %s194 = scalar_select %p193, %s192, 3
        %s195 = smul.u32 16, %s194
        %v196 = vld [vmem:[%s185] sm:$0x77]
        %v197 = vld [vmem:[%s185 + $0x8] sm:$0x7]
        %198 = vst [vmem:[#allocation2] sm:$0x77] %v196
        %199 = vst [vmem:[#allocation2 + $0x8] sm:$0x7] %v197
        %v200 = vlaneseq
        %vm201 = vcmp.ge.s32.totalorder %v200, 0
        %vm202 = vcmp.lt.s32.totalorder %v200, 384
        %vm203 = vmand %vm201, %vm202
        %s204 = scalar_lea.vmem [#allocation2], 3
        %205 = vst.msk [vmem:[%s204] ss:$4 sm:$0x7] %vm203, 1.0
        %v206 = vld [vmem:[%s1] sm:$0xff]
        %v207 = vld [vmem:[%s1 + $0x8] sm:$0xff]
        %v208 = vld [vmem:[%s1 + $0x10] sm:$0xff]
        %v209 = vld [vmem:[%s1 + $0x18] sm:$0x7f]
        %v210 = vld [vmem:[#allocation2] sm:$0xff]
        %v211 = vld [vmem:[#allocation2 + $0x8] sm:$0xf]
        %v214 = vcombine.high %v210, %v210
        %vm215 = vcmask 31744
        %v217 = vsel %vm215, %v206, 0
        %v220 = vsel %vm215, %v207, 0
        %v223 = vsel %vm215, %v208, 0
        %v226 = vsel %vm215, %v209, 0
        %vm228 = vcmask 1043456
        %v229 = vsel %vm228, %v210, 0
        %v231 = vsel %vm228, %v214, 0
        %v233 = vsel %vm228, %v211, 0
        %235 = vmatprep.subr.mxu0 0.0
        %236 = vmatpush1.msra.mxu0 0.0
        %237 = vmatprep.subr.mxu0 0.0
        %238 = vmatpush1.msra.mxu0 0.0
        %239 = vmatprep.subr.mxu0 0.0
        %240 = vmatpush1.msra.mxu0 0.0
        %241 = vmatprep.subr.mxu0 0.0
        %242 = vmatpush1.msra.mxu0 0.0
        %243 = vmatprep.subr.mxu0 0.0
        %244 = vmatpush1.msra.mxu0 0.0
        %245 = vmatprep.subr.mxu0 0.0
        %246 = vmatpush1.msra.mxu0 0.0
        %247 = vmatprep.subr.mxu0 0.0
        %248 = vmatpush1.msra.mxu0 0.0
        %249 = vmatprep.subr.mxu0 0.0
        %250 = vmatpush1.msra.mxu0 0.0
        %251 = vmatprep.subr.mxu0 0.0
        %252 = vmatpush1.msra.mxu0 0.0
        %253 = vmatprep.subr.mxu0 0.0
        %254 = vmatpush1.msra.mxu0 0.0
        %255 = vmatprep.subr.mxu0 0.0
        %256 = vmatpush1.msra.mxu0 0.0
        %257 = vmatprep.subr.mxu0 0.0
        %258 = vmatpush1.msra.mxu0 0.0
        %259 = vmatprep.subr.mxu0 0.0
        %260 = vmatpush1.msra.mxu0 0.0
        %261 = vmatprep.subr.mxu0 0.0
        %262 = vmatpush1.msra.mxu0 0.0
        %263 = vmatprep.subr.mxu0 0.0
        %264 = vmatpush1.msra.mxu0 0.0
        %265 = vmatprep.subr.mxu0 %v231
        %266 = vmatpush1.msra.mxu0 %v229
        %267 = vmatprep.subr.mxu0 0.0
        %268 = vmatpush2.msra.mxu0 0.0
        %269 = vmatprep.subr.mxu0 0.0
        %270 = vmatpush2.msra.mxu0 0.0
        %271 = vmatprep.subr.mxu0 0.0
        %272 = vmatpush2.msra.mxu0 0.0
        %273 = vmatprep.subr.mxu0 0.0
        %274 = vmatpush2.msra.mxu0 0.0
        %275 = vmatprep.subr.mxu0 0.0
        %276 = vmatpush2.msra.mxu0 0.0
        %277 = vmatprep.subr.mxu0 0.0
        %278 = vmatpush2.msra.mxu0 0.0
        %279 = vmatprep.subr.mxu0 0.0
        %280 = vmatpush2.msra.mxu0 0.0
        %281 = vmatprep.subr.mxu0 0.0
        %282 = vmatpush2.msra.mxu0 0.0
        %283 = vmatprep.subr.mxu0 0.0
        %284 = vmatpush2.msra.mxu0 0.0
        %285 = vmatprep.subr.mxu0 0.0
        %286 = vmatpush2.msra.mxu0 0.0
        %287 = vmatprep.subr.mxu0 0.0
        %288 = vmatpush2.msra.mxu0 0.0
        %289 = vmatprep.subr.mxu0 0.0
        %290 = vmatpush2.msra.mxu0 0.0
        %291 = vmatprep.subr.mxu0 0.0
        %292 = vmatpush2.msra.mxu0 0.0
        %293 = vmatprep.subr.mxu0 0.0
        %294 = vmatpush2.msra.mxu0 0.0
        %295 = vmatprep.subr.mxu0 0.0
        %296 = vmatpush2.msra.mxu0 0.0
        %297 = vmatprep.subr.mxu0 0.0
        %298 = vmatpush2.msra.mxu0 0.0
        %299 = vmatprep.mubr.f32.mxu0 0.0
        %300 = vmatmul.mubr.f32.gmra.mxu0 %v217
        %v301 = vpop.f32.mrf.mxu0
        %v302 = vadd.f32 0.0, %v301
        %v303 = vpop.f32.mrf.mxu0
        %v304 = vadd.f32 0.0, %v303
        %305 = vmatprep.mubr.f32.mxu0 0.0
        %306 = vmatmul.mubr.f32.gmra.mxu0 %v220
        %v307 = vpop.f32.mrf.mxu0
        %v308 = vadd.f32 0.0, %v307
        %v309 = vpop.f32.mrf.mxu0
        %v310 = vadd.f32 0.0, %v309
        %311 = vmatprep.mubr.f32.mxu0 0.0
        %312 = vmatmul.mubr.f32.gmra.mxu0 %v223
        %v313 = vpop.f32.mrf.mxu0
        %v314 = vadd.f32 0.0, %v313
        %v315 = vpop.f32.mrf.mxu0
        %v316 = vadd.f32 0.0, %v315
        %317 = vmatprep.mubr.f32.mxu0 0.0
        %318 = vmatmul.mubr.f32.gmra.mxu0 %v226
        %v319 = vpop.f32.mrf.mxu0
        %v320 = vadd.f32 0.0, %v319
        %v321 = vpop.f32.mrf.mxu0
        %v322 = vadd.f32 0.0, %v321
        %323 = vdwg.mxu0
        %324 = vmatprep.subr.mxu0 0.0
        %325 = vmatpush1.msra.mxu0 0.0
        %326 = vmatprep.subr.mxu0 0.0
        %327 = vmatpush1.msra.mxu0 0.0
        %328 = vmatprep.subr.mxu0 0.0
        %329 = vmatpush1.msra.mxu0 0.0
        %330 = vmatprep.subr.mxu0 0.0
        %331 = vmatpush1.msra.mxu0 0.0
        %332 = vmatprep.subr.mxu0 0.0
        %333 = vmatpush1.msra.mxu0 0.0
        %334 = vmatprep.subr.mxu0 0.0
        %335 = vmatpush1.msra.mxu0 0.0
        %336 = vmatprep.subr.mxu0 0.0
        %337 = vmatpush1.msra.mxu0 0.0
        %338 = vmatprep.subr.mxu0 0.0
        %339 = vmatpush1.msra.mxu0 0.0
        %340 = vmatprep.subr.mxu0 0.0
        %341 = vmatpush1.msra.mxu0 0.0
        %342 = vmatprep.subr.mxu0 0.0
        %343 = vmatpush1.msra.mxu0 0.0
        %344 = vmatprep.subr.mxu0 0.0
        %345 = vmatpush1.msra.mxu0 0.0
        %346 = vmatprep.subr.mxu0 0.0
        %347 = vmatpush1.msra.mxu0 0.0
        %348 = vmatprep.subr.mxu0 0.0
        %349 = vmatpush1.msra.mxu0 0.0
        %350 = vmatprep.subr.mxu0 0.0
        %351 = vmatpush1.msra.mxu0 0.0
        %352 = vmatprep.subr.mxu0 0.0
        %353 = vmatpush1.msra.mxu0 0.0
        %354 = vmatprep.subr.mxu0 0.0
        %355 = vmatpush1.msra.mxu0 %v233
        %356 = vmatprep.subr.mxu0 0.0
        %357 = vmatpush2.msra.mxu0 0.0
        %358 = vmatprep.subr.mxu0 0.0
        %359 = vmatpush2.msra.mxu0 0.0
        %360 = vmatprep.subr.mxu0 0.0
        %361 = vmatpush2.msra.mxu0 0.0
        %362 = vmatprep.subr.mxu0 0.0
        %363 = vmatpush2.msra.mxu0 0.0
        %364 = vmatprep.subr.mxu0 0.0
        %365 = vmatpush2.msra.mxu0 0.0
        %366 = vmatprep.subr.mxu0 0.0
        %367 = vmatpush2.msra.mxu0 0.0
        %368 = vmatprep.subr.mxu0 0.0
        %369 = vmatpush2.msra.mxu0 0.0
        %370 = vmatprep.subr.mxu0 0.0
        %371 = vmatpush2.msra.mxu0 0.0
        %372 = vmatprep.subr.mxu0 0.0
        %373 = vmatpush2.msra.mxu0 0.0
        %374 = vmatprep.subr.mxu0 0.0
        %375 = vmatpush2.msra.mxu0 0.0
        %376 = vmatprep.subr.mxu0 0.0
        %377 = vmatpush2.msra.mxu0 0.0
        %378 = vmatprep.subr.mxu0 0.0
        %379 = vmatpush2.msra.mxu0 0.0
        %380 = vmatprep.subr.mxu0 0.0
        %381 = vmatpush2.msra.mxu0 0.0
        %382 = vmatprep.subr.mxu0 0.0
        %383 = vmatpush2.msra.mxu0 0.0
        %384 = vmatprep.subr.mxu0 0.0
        %385 = vmatpush2.msra.mxu0 0.0
        %386 = vmatprep.subr.mxu0 0.0
        %387 = vmatpush2.msra.mxu0 0.0
        %388 = vmatprep.mubr.f32.mxu0 0.0
        %389 = vmatmul.mubr.f32.gmra.mxu0 %v217
        %v390 = vpop.f32.mrf.mxu0
        %v391 = vadd.f32 0.0, %v390
        %v392 = vpop.f32.mrf.mxu0
        %393 = vmatprep.mubr.f32.mxu0 0.0
        %394 = vmatmul.mubr.f32.gmra.mxu0 %v220
        %v395 = vpop.f32.mrf.mxu0
        %v396 = vadd.f32 0.0, %v395
        %v397 = vpop.f32.mrf.mxu0
        %398 = vmatprep.mubr.f32.mxu0 0.0
        %399 = vmatmul.mubr.f32.gmra.mxu0 %v223
        %v400 = vpop.f32.mrf.mxu0
        %v401 = vadd.f32 0.0, %v400
        %v402 = vpop.f32.mrf.mxu0
        %403 = vmatprep.mubr.f32.mxu0 0.0
        %404 = vmatmul.mubr.f32.gmra.mxu0 %v226
        %v405 = vpop.f32.mrf.mxu0
        %v406 = vadd.f32 0.0, %v405
        %v407 = vpop.f32.mrf.mxu0
        %408 = vdwg.mxu0
        %v409 = vmax.f32 %v302, 0.0
        %v410 = vmax.f32 %v304, 0.0
        %v411 = vmax.f32 %v391, 0.0
        %v412 = vmax.f32 %v308, 0.0
        %v413 = vmax.f32 %v310, 0.0
        %v414 = vmax.f32 %v396, 0.0
        %v415 = vmax.f32 %v314, 0.0
        %v416 = vmax.f32 %v316, 0.0
        %v417 = vmax.f32 %v401, 0.0
        %v418 = vmax.f32 %v320, 0.0
        %v419 = vmax.f32 %v322, 0.0
        %v420 = vmax.f32 %v406, 0.0
        %v421 = vld [vmem:[%s2] sm:$0x1]
        %vm422 = vcmask 252928
        %v424 = vsel %vm422, %v421, 0
        %vm426 = vcmask 1046528
        %v428 = vsel %vm426, %v418, 0
        %v431 = vsel %vm426, %v419, 0
        %v434 = vsel %vm426, %v420, 0
        %436 = vmatprep.subr.mxu0 0.0
        %437 = vmatpush1.msra.mxu0 0.0
        %438 = vmatprep.subr.mxu0 0.0
        %439 = vmatpush1.msra.mxu0 0.0
        %440 = vmatprep.subr.mxu0 0.0
        %441 = vmatpush1.msra.mxu0 0.0
        %442 = vmatprep.subr.mxu0 0.0
        %443 = vmatpush1.msra.mxu0 0.0
        %444 = vmatprep.subr.mxu0 0.0
        %445 = vmatpush1.msra.mxu0 0.0
        %446 = vmatprep.subr.mxu0 0.0
        %447 = vmatpush1.msra.mxu0 0.0
        %448 = vmatprep.subr.mxu0 0.0
        %449 = vmatpush1.msra.mxu0 0.0
        %450 = vmatprep.subr.mxu0 0.0
        %451 = vmatpush1.msra.mxu0 0.0
        %452 = vmatprep.subr.mxu0 0.0
        %453 = vmatpush1.msra.mxu0 0.0
        %454 = vmatprep.subr.mxu0 0.0
        %455 = vmatpush1.msra.mxu0 0.0
        %456 = vmatprep.subr.mxu0 0.0
        %457 = vmatpush1.msra.mxu0 0.0
        %458 = vmatprep.subr.mxu0 0.0
        %459 = vmatpush1.msra.mxu0 0.0
        %460 = vmatprep.subr.mxu0 %v431
        %461 = vmatpush1.msra.mxu0 %v428
        %462 = vmatprep.subr.mxu0 %v416
        %463 = vmatpush1.msra.mxu0 %v415
        %464 = vmatprep.subr.mxu0 %v413
        %465 = vmatpush1.msra.mxu0 %v412
        %466 = vmatprep.subr.mxu0 %v410
        %467 = vmatpush1.msra.mxu0 %v409
        %468 = vmatprep.subr.mxu0 0.0
        %469 = vmatpush2.msra.mxu0 0.0
        %470 = vmatprep.subr.mxu0 0.0
        %471 = vmatpush2.msra.mxu0 0.0
        %472 = vmatprep.subr.mxu0 0.0
        %473 = vmatpush2.msra.mxu0 0.0
        %474 = vmatprep.subr.mxu0 0.0
        %475 = vmatpush2.msra.mxu0 0.0
        %476 = vmatprep.subr.mxu0 0.0
        %477 = vmatpush2.msra.mxu0 0.0
        %478 = vmatprep.subr.mxu0 0.0
        %479 = vmatpush2.msra.mxu0 0.0
        %480 = vmatprep.subr.mxu0 0.0
        %481 = vmatpush2.msra.mxu0 0.0
        %482 = vmatprep.subr.mxu0 0.0
        %483 = vmatpush2.msra.mxu0 0.0
        %484 = vmatprep.subr.mxu0 0.0
        %485 = vmatpush2.msra.mxu0 0.0
        %486 = vmatprep.subr.mxu0 0.0
        %487 = vmatpush2.msra.mxu0 0.0
        %488 = vmatprep.subr.mxu0 0.0
        %489 = vmatpush2.msra.mxu0 0.0
        %490 = vmatprep.subr.mxu0 0.0
        %491 = vmatpush2.msra.mxu0 0.0
        %492 = vmatprep.subr.mxu0 0.0
        %493 = vmatpush2.msra.mxu0 0.0
        %494 = vmatprep.subr.mxu0 0.0
        %495 = vmatpush2.msra.mxu0 0.0
        %496 = vmatprep.subr.mxu0 0.0
        %497 = vmatpush2.msra.mxu0 0.0
        %498 = vmatprep.subr.mxu0 0.0
        %499 = vmatpush2.msra.mxu0 0.0
        %500 = vmatprep.mubr.f32.mxu0 0.0
        %501 = vmatmul.mubr.f32.gmra.mxu0 %v424
        %v502 = vpop.f32.mrf.mxu0
        %v503 = vadd.f32 0.0, %v502
        %v504 = vpop.f32.mrf.mxu0
        %v505 = vadd.f32 0.0, %v504
        %506 = vdwg.mxu0
        %507 = vmatprep.subr.mxu0 0.0
        %508 = vmatpush1.msra.mxu0 0.0
        %509 = vmatprep.subr.mxu0 0.0
        %510 = vmatpush1.msra.mxu0 0.0
        %511 = vmatprep.subr.mxu0 0.0
        %512 = vmatpush1.msra.mxu0 0.0
        %513 = vmatprep.subr.mxu0 0.0
        %514 = vmatpush1.msra.mxu0 0.0
        %515 = vmatprep.subr.mxu0 0.0
        %516 = vmatpush1.msra.mxu0 0.0
        %517 = vmatprep.subr.mxu0 0.0
        %518 = vmatpush1.msra.mxu0 0.0
        %519 = vmatprep.subr.mxu0 0.0
        %520 = vmatpush1.msra.mxu0 0.0
        %521 = vmatprep.subr.mxu0 0.0
        %522 = vmatpush1.msra.mxu0 0.0
        %523 = vmatprep.subr.mxu0 0.0
        %524 = vmatpush1.msra.mxu0 0.0
        %525 = vmatprep.subr.mxu0 0.0
        %526 = vmatpush1.msra.mxu0 0.0
        %527 = vmatprep.subr.mxu0 0.0
        %528 = vmatpush1.msra.mxu0 0.0
        %529 = vmatprep.subr.mxu0 0.0
        %530 = vmatpush1.msra.mxu0 0.0
        %531 = vmatprep.subr.mxu0 0.0
        %532 = vmatpush1.msra.mxu0 %v434
        %533 = vmatprep.subr.mxu0 0.0
        %534 = vmatpush1.msra.mxu0 %v417
        %535 = vmatprep.subr.mxu0 0.0
        %536 = vmatpush1.msra.mxu0 %v414
        %537 = vmatprep.subr.mxu0 0.0
        %538 = vmatpush1.msra.mxu0 %v411
        %539 = vmatprep.subr.mxu0 0.0
        %540 = vmatpush2.msra.mxu0 0.0
        %541 = vmatprep.subr.mxu0 0.0
        %542 = vmatpush2.msra.mxu0 0.0
        %543 = vmatprep.subr.mxu0 0.0
        %544 = vmatpush2.msra.mxu0 0.0
        %545 = vmatprep.subr.mxu0 0.0
        %546 = vmatpush2.msra.mxu0 0.0
        %547 = vmatprep.subr.mxu0 0.0
        %548 = vmatpush2.msra.mxu0 0.0
        %549 = vmatprep.subr.mxu0 0.0
        %550 = vmatpush2.msra.mxu0 0.0
        %551 = vmatprep.subr.mxu0 0.0
        %552 = vmatpush2.msra.mxu0 0.0
        %553 = vmatprep.subr.mxu0 0.0
        %554 = vmatpush2.msra.mxu0 0.0
        %555 = vmatprep.subr.mxu0 0.0
        %556 = vmatpush2.msra.mxu0 0.0
        %557 = vmatprep.subr.mxu0 0.0
        %558 = vmatpush2.msra.mxu0 0.0
        %559 = vmatprep.subr.mxu0 0.0
        %560 = vmatpush2.msra.mxu0 0.0
        %561 = vmatprep.subr.mxu0 0.0
        %562 = vmatpush2.msra.mxu0 0.0
        %563 = vmatprep.subr.mxu0 0.0
        %564 = vmatpush2.msra.mxu0 0.0
        %565 = vmatprep.subr.mxu0 0.0
        %566 = vmatpush2.msra.mxu0 0.0
        %567 = vmatprep.subr.mxu0 0.0
        %568 = vmatpush2.msra.mxu0 0.0
        %569 = vmatprep.subr.mxu0 0.0
        %570 = vmatpush2.msra.mxu0 0.0
        %571 = vmatprep.mubr.f32.mxu0 0.0
        %572 = vmatmul.mubr.f32.gmra.mxu0 %v424
        %v573 = vpop.f32.mrf.mxu0
        %v574 = vadd.f32 0.0, %v573
        %v575 = vpop.f32.mrf.mxu0
        %576 = vdwg.mxu0
        %v577 = vtanh.pop %v503
        %v578 = vtanh.pop %v505
        %v579 = vtanh.pop %v574
        %v580 = vmul.f32 %v577, 2.0
        %v581 = vmul.f32 %v578, 2.0
        %v582 = vmul.f32 %v579, 2.0
        %v586 = vcombine.low %v580, %v581
        %v588 = vunpack.c.l.s4 1966171168
        %v589 = vunpack.c.0.s8 %v588
        %v590 = vlaneseq
        %v591 = vshrl.u32 %v590, 7
        %v592 = vsub.s32 %v589, %v591
        %v593 = vrot.slane %v586, %v592
        %v595 = vunpack.c.l.s4 1966171168
        %v596 = vunpack.c.0.s8 %v595
        %v597 = vlaneseq
        %v598 = vshrl.u32 %v597, 7
        %v599 = vsub.s32 %v596, %v598
        %v600 = vrot.slane %v582, %v599
        %v601 = vcombine.low %v593, %v600
        %v603 = vunpack.c.l.s4 1966171168
        %v604 = vunpack.c.0.s8 %v603
        %v605 = vlaneseq
        %v606 = vshrl.u32 %v605, 7
        %v607 = vsub.s32 %v604, %v606
        %v608 = vrot.slane %v601, %v607
        %610 = vst.msk [vmem:[%s176] sm:$0x7] %vm203, %v608
        %s611 = sand.u32 %s93, 1
        %s612 = scalar_lea.sflag [#allocation4], %s611
        %s613 = sand.u32 %s93, 1
        %s614 = smul.addr %s613, 3
        %s615 = scalar_lea.vmem [#allocation3], %s614
        // Predicated region
        $region33: #{tpu_custom_call.1} parent=31 // pred_check
          %p616 = pneg %p103
        $region34: #{tpu_custom_call.1} parent=31 // pred_check_branch
          %618 = sbr.rel (%p616) target = $region36
        $region35: #{tpu_custom_call.1} parent=31 // pred_region
          %s619 = smul.u32 3, %s17
          %s620 = ssub.s32 5, %s619
          %p621 = scmp.lt.s32.totalorder %s620, 3
          %s622 = scalar_select %p621, %s620, 3
          %s623 = smul.u32 16, %s622
          %s625 = ssub.s32 48, %s623
          %626 = vsyncadd %s612, %s625
          %p627 = scmp.ne.s32.totalorder 0, %s623
          %s628 = smul.addr %s619, 16
          %s629 = scalar_lea.hbm %s3, %s628
          %s630 = sshll.u32 %s622, 4
          %s631 = sshll.u32 %s615, 4
          %s632 = int_to_ptr.vmem [resolvable:$true] %s631
          %634 = dma.vmem_to_hbm [thread:$0]  (%p627), %s632, %s630, %s629, %s612
        $region36: #{tpu_custom_call.1} parent=31 // pred_fallthru
          _
      $region32: #{tpu_custom_call.1} parent=5 // pred_fallthru
        _
      %p635 = scmp.le.s32.totalorder 2, %s12
      // Predicated region
      $region37: #{tpu_custom_call.1} parent=5 // pred_check
        %p636 = pneg %p635
      $region38: #{tpu_custom_call.1} parent=5 // pred_check_branch
        %638 = sbr.rel (%p636) target = $region40
      $region39: #{tpu_custom_call.1} parent=5 // pred_region
        %s639 = ssub.s32 %s12, 2
        // Predicated region
        $region41: #{tpu_custom_call.1} parent=39 // pred_check
          %p640 = pneg %p109
        $region42: #{tpu_custom_call.1} parent=39 // pred_check_branch
          %642 = sbr.rel (%p640) target = $region44
        $region43: #{tpu_custom_call.1} parent=39 // pred_region
          %s643 = sand.u32 %s94, 1
          %s644 = scalar_lea.sflag [#allocation4], %s643
          %s645 = sand.u32 %s94, 1
          %s646 = smul.addr %s645, 3
          %s647 = scalar_lea.vmem [#allocation3], %s646
          %648 = dma.done %s644, 48
        $region44: #{tpu_custom_call.1} parent=39 // pred_fallthru
          _
      $region40: #{tpu_custom_call.1} parent=5 // pred_fallthru
        _
    $region6: #{tpu_custom_call.1} parent=1 // loop_footer
      %s16 = sadd.s32 1, %s12
    $region7: #{tpu_custom_call.1} parent=1 // loop_footer_branch
      %11 = sbr.rel target = $region3
    $region8: #{tpu_custom_call.1} parent=1 // loop_exit
      _
    %649 = vsyncpa [#allocation4], 1
    %s650 = scalar_lea.sflag [#allocation4], 1
    %651 = vsyncpa %s650, 1

</llo_original>
